<compile_context>
chip_gen: v6e
topology: v6e:2x2x1
jax: 0.10.0
libtpu: 0.0.40
codegen_flags: <defaults>
</compile_context>

<pallas_src>
import jax
import jax.numpy as jnp
from jax.experimental import pallas as pl
from jax.experimental.pallas import tpu as pltpu


def _linear_kernel(x_ref, wt_ref, b_ref, o_ref):
    # x_ref: (TILE_B, IN), wt_ref: (IN, OUT), b_ref: (1, OUT), o_ref: (TILE_B, OUT)
    in_features = wt_ref.shape[0]
    # Start the accumulator at the bias (broadcast along the batch rows).
    acc = jnp.broadcast_to(b_ref[...], o_ref.shape)
    # IN == 4: a statically-unrolled VPU FMA chain; each term broadcasts a
    # (TILE_B, 1) column of x against a (1, OUT) row of W^T.
    for k in range(in_features):
        acc = acc + x_ref[:, k:k + 1] * wt_ref[k:k + 1, :]
    o_ref[...] = acc.astype(o_ref.dtype)


def _round_up(n, m):
    return ((n + m - 1) // m) * m


def linear_pallas(x, weight, bias, max_tile_b=512):
    """Equivalent of torch.nn.Linear forward: x @ weight.T + bias."""
    B, IN = x.shape
    OUT, IN_w = weight.shape
    assert IN == IN_w

    # Pre-transpose the weight once at trace time: (OUT, IN) -> (IN, OUT).
    wt = weight.T
    bias2d = bias.reshape(1, OUT)

    # Batch tile: multiple of 8 sublanes, capped so the lane-padded VMEM
    # footprint (TILE_B x 128 lanes x 4 B per buffer, double-buffered for
    # x and out) stays far below even v7x's 64 MiB VMEM.
    tile_b = min(max_tile_b, _round_up(B, 8))
    b_padded = _round_up(B, tile_b)
    if b_padded != B:
        x = jnp.pad(x, ((0, b_padded - B), (0, 0)))

    grid = (b_padded // tile_b,)

    flops = 2 * b_padded * IN * OUT
    bytes_accessed = 4 * (b_padded * IN + IN * OUT + OUT + b_padded * OUT)

    out = pl.pallas_call(
        _linear_kernel,
        out_shape=jax.ShapeDtypeStruct((b_padded, OUT), x.dtype),
        grid_spec=pltpu.PrefetchScalarGridSpec(
            num_scalar_prefetch=0,
            grid=grid,
            in_specs=[
                # x tile walks the batch; weight/bias stay resident.
                pl.BlockSpec((tile_b, IN), lambda i: (i, 0)),
                pl.BlockSpec((IN, OUT), lambda i: (0, 0)),
                pl.BlockSpec((1, OUT), lambda i: (0, 0)),
            ],
            out_specs=pl.BlockSpec((tile_b, OUT), lambda i: (i, 0)),
        ),
        compiler_params=pltpu.CompilerParams(
            dimension_semantics=("parallel",),
        ),
        cost_estimate=pl.CostEstimate(
            flops=flops, transcendentals=0, bytes_accessed=bytes_accessed
        ),
    )(x, wt, bias2d)

    if b_padded != B:
        out = out[:B]
    return out


class DummyModel00:
    """JAX/Pallas port of the PyTorch DummyModel00 (Linear(4, 5))."""

    def __init__(self, key):
        in_features, out_features = 4, 5
        k_w, k_b = jax.random.split(key)
        # Deterministic init mimicking PyTorch's default U(-1/sqrt(in), 1/sqrt(in))
        bound = 1.0 / jnp.sqrt(jnp.float32(in_features))
        self.weight = jax.random.uniform(
            k_w, (out_features, in_features), jnp.float32, -bound, bound
        )
        self.bias = jax.random.uniform(
            k_b, (out_features,), jnp.float32, -bound, bound
        )

    def __call__(self, x):
        return linear_pallas(x, self.weight, self.bias)


if __name__ == "__main__":
    key = jax.random.PRNGKey(0)
    k_model, k_x = jax.random.split(key)

    model = DummyModel00(k_model)

    batch = 8
    x = jax.random.normal(k_x, (batch, 4), dtype=jnp.float32)

    y = model(x)
    y = jax.block_until_ready(y)

    # Cross-check against plain JAX reference.
    y_ref = x @ model.weight.T + model.bias
    assert y.shape == (batch, 5)
    assert jnp.allclose(y, y_ref, atol=1e-5, rtol=1e-5)

    print("KERNEL_OK")
</pallas_src>

<mosaic_0001>
module attributes {stable_mosaic.version = 11 : i64} {
  func.func @_linear_kernel(%arg0: i32, %arg1: memref<8x4xf32, #tpu.memory_space<vmem>>, %arg2: memref<4x5xf32, #tpu.memory_space<vmem>>, %arg3: memref<1x5xf32, #tpu.memory_space<vmem>>, %arg4: memref<8x5xf32, #tpu.memory_space<vmem>>) attributes {dimension_semantics = [#tpu.dimension_semantics<parallel>], iteration_bounds = array<i64: 1>, scalar_prefetch = 0 : i64, scratch_operands = 0 : i64, tpu.core_type = #tpu.core_type<tc>, window_params = [{transform_indices = @transform_0, window_bounds = array<i64: 8, 4>}, {pipeline_mode = #tpu.pipeline_mode<synchronous>, transform_indices = @transform_1, window_bounds = array<i64: 4, 5>}, {pipeline_mode = #tpu.pipeline_mode<synchronous>, transform_indices = @transform_2, window_bounds = array<i64: 1, 5>}, {transform_indices = @transform_3, window_bounds = array<i64: 8, 5>}]} {
    %c0 = arith.constant 0 : index
    %c0_0 = arith.constant 0 : index
    %0 = vector.load %arg3[%c0, %c0_0] : memref<1x5xf32, #tpu.memory_space<vmem>>, vector<1x5xf32>
    %1 = vector.shape_cast %0 : vector<1x5xf32> to vector<1x5xf32>
    %2 = vector.broadcast %1 : vector<1x5xf32> to vector<8x5xf32>
    %c0_1 = arith.constant 0 : index
    %c0_2 = arith.constant 0 : index
    %3 = vector.load %arg1[%c0_1, %c0_2] : memref<8x4xf32, #tpu.memory_space<vmem>>, vector<8x1xf32>
    %c0_3 = arith.constant 0 : index
    %c0_4 = arith.constant 0 : index
    %4 = vector.load %arg2[%c0_3, %c0_4] : memref<4x5xf32, #tpu.memory_space<vmem>>, vector<1x5xf32>
    %5 = vector.broadcast %3 : vector<8x1xf32> to vector<8x5xf32>
    %6 = vector.broadcast %4 : vector<1x5xf32> to vector<8x5xf32>
    %7 = arith.mulf %5, %6 : vector<8x5xf32>
    %8 = arith.addf %2, %7 : vector<8x5xf32>
    %c0_5 = arith.constant 0 : index
    %c1 = arith.constant 1 : index
    %9 = vector.load %arg1[%c0_5, %c1] : memref<8x4xf32, #tpu.memory_space<vmem>>, vector<8x1xf32>
    %c1_6 = arith.constant 1 : index
    %c0_7 = arith.constant 0 : index
    %10 = vector.load %arg2[%c1_6, %c0_7] : memref<4x5xf32, #tpu.memory_space<vmem>>, vector<1x5xf32>
    %11 = vector.broadcast %9 : vector<8x1xf32> to vector<8x5xf32>
    %12 = vector.broadcast %10 : vector<1x5xf32> to vector<8x5xf32>
    %13 = arith.mulf %11, %12 : vector<8x5xf32>
    %14 = arith.addf %8, %13 : vector<8x5xf32>
    %c0_8 = arith.constant 0 : index
    %c2 = arith.constant 2 : index
    %15 = vector.load %arg1[%c0_8, %c2] : memref<8x4xf32, #tpu.memory_space<vmem>>, vector<8x1xf32>
    %c2_9 = arith.constant 2 : index
    %c0_10 = arith.constant 0 : index
    %16 = vector.load %arg2[%c2_9, %c0_10] : memref<4x5xf32, #tpu.memory_space<vmem>>, vector<1x5xf32>
    %17 = vector.broadcast %15 : vector<8x1xf32> to vector<8x5xf32>
    %18 = vector.broadcast %16 : vector<1x5xf32> to vector<8x5xf32>
    %19 = arith.mulf %17, %18 : vector<8x5xf32>
    %20 = arith.addf %14, %19 : vector<8x5xf32>
    %c0_11 = arith.constant 0 : index
    %c3 = arith.constant 3 : index
    %21 = vector.load %arg1[%c0_11, %c3] : memref<8x4xf32, #tpu.memory_space<vmem>>, vector<8x1xf32>
    %c3_12 = arith.constant 3 : index
    %c0_13 = arith.constant 0 : index
    %22 = vector.load %arg2[%c3_12, %c0_13] : memref<4x5xf32, #tpu.memory_space<vmem>>, vector<1x5xf32>
    %23 = vector.broadcast %21 : vector<8x1xf32> to vector<8x5xf32>
    %24 = vector.broadcast %22 : vector<1x5xf32> to vector<8x5xf32>
    %25 = arith.mulf %23, %24 : vector<8x5xf32>
    %26 = arith.addf %20, %25 : vector<8x5xf32>
    %c0_14 = arith.constant 0 : index
    %c0_15 = arith.constant 0 : index
    %27 = vector.load %arg4[%c0_14, %c0_15] : memref<8x5xf32, #tpu.memory_space<vmem>>, vector<8x5xf32>
    tpu.vector_store %arg4[%c0_14, %c0_15], %26 {strides = array<i32>} : memref<8x5xf32, #tpu.memory_space<vmem>>, vector<8x5xf32>,
    return
  }
  func.func @transform_0(%arg0: i32) -> (i32, i32) {
    %c0_i32 = arith.constant 0 : i32
    %c0_i32_0 = arith.constant 0 : i32
    return %arg0, %c0_i32 : i32, i32
  }
  func.func @transform_1(%arg0: i32) -> (i32, i32) {
    %c0_i32 = arith.constant 0 : i32
    %c0_i32_0 = arith.constant 0 : i32
    %c0_i32_1 = arith.constant 0 : i32
    return %c0_i32, %c0_i32_0 : i32, i32
  }
  func.func @transform_2(%arg0: i32) -> (i32, i32) {
    %c0_i32 = arith.constant 0 : i32
    %c0_i32_0 = arith.constant 0 : i32
    %c0_i32_1 = arith.constant 0 : i32
    return %c0_i32, %c0_i32_0 : i32, i32
  }
  func.func @transform_3(%arg0: i32) -> (i32, i32) {
    %c0_i32 = arith.constant 0 : i32
    %c0_i32_0 = arith.constant 0 : i32
    return %arg0, %c0_i32 : i32, i32
  }
}

</mosaic_0001>

<llo_original>
// kernel: tpu_custom_call.1
$region0: #{tpu_custom_call.1}
  #allocation0 [shape = 'u32[]', space=smem, size = 0x4, offset = 0x4, fixed_abs, tag = 'smem constant byte address 0x4 - core index']
  #allocation1 [shape = 'u32[144,128]{1,0:T(1,128)}', space=vmem, size = 0x12000, scoped, tag = 'internal scratch']
  %s0 = inlined_call_operand.vmem [shape: f32[8,4], index: 0, kind: input, shape index: {}]
  %s1 = inlined_call_operand.vmem [shape: f32[4,5], index: 1, kind: input, shape index: {}]
  %s2 = inlined_call_operand.vmem [shape: f32[1,5], index: 2, kind: input, shape index: {}]
  %s3 = inlined_call_operand.hbm [shape: f32[8,5], index: 3, kind: output, shape index: {}]
  %s4 = sld [smem:[#allocation0]]
  $region22: #{tpu_custom_call.1} parent=0
    _
  %s6 = ssub.s32 1, %s4
  %s7 = scalar_select 0, %s6, %s4
  $region1: #{tpu_custom_call.1} parent=0
    #allocation2 [shape = 'u8[4096]{0}', space=vmem, size = 0x1000, scoped, tag = 'output window, operand 0, single buffered']
    #allocation3 [shape = 's32[1]{0}', space=sflag, size = 0x4, scoped, tag = 'scoped memory for tpu_custom_call.1']
    %8 = vsyncpa [#allocation3], 0
    // Predicated region
    $region2: #{tpu_custom_call.1} parent=1 // pred_check
      _
    $region3: #{tpu_custom_call.1} parent=1 // pred_check_branch
      %10 = sbr.rel (0) target = $region5
    $region4: #{tpu_custom_call.1} parent=1 // pred_region
      _
    $region5: #{tpu_custom_call.1} parent=1 // pred_fallthru
      _
    // Predicated region
    $region6: #{tpu_custom_call.1} parent=1 // pred_check
      _
    $region7: #{tpu_custom_call.1} parent=1 // pred_check_branch
      %12 = sbr.rel (0) target = $region9
    $region8: #{tpu_custom_call.1} parent=1 // pred_region
      _
    $region9: #{tpu_custom_call.1} parent=1 // pred_fallthru
      _
    // Predicated region
    $region10: #{tpu_custom_call.1} parent=1 // pred_check
      _
    $region11: #{tpu_custom_call.1} parent=1 // pred_check_branch
      %14 = sbr.rel (0) target = $region13
    $region12: #{tpu_custom_call.1} parent=1 // pred_region
      _
    $region13: #{tpu_custom_call.1} parent=1 // pred_fallthru
      _
    %v15 = vld [vmem:[%s2] sm:$0x1]
    %v17 = vlaneseq
    %v18 = vshrl.u32 %v17, 7
    %v19 = vsub.s32 0, %v18
    %v20 = vrot.slane %v15, %v19
    %v22 = vld [vmem:[%s0] sm:$0xff]
    %v23 = vld [vmem:[%s1] sm:$0x1]
    %25 = vset.pattern.permute.xlu0 0
    %26 = vperm.xlu0 %25, %v22
    %v27 = vpop.permute.xlu0 %26
    %v29 = vlaneseq
    %v30 = vshrl.u32 %v29, 7
    %v31 = vsub.s32 0, %v30
    %v32 = vrot.slane %v23, %v31
    %v33 = vmul.f32 %v27, %v32
    %v34 = vadd.f32 %v20, %v33
    %v35 = vld [vmem:[%s1 + $0x1] sm:$0x1]
    %36 = vset.pattern.permute.xlu0 1
    %37 = vperm.xlu0 %36, %v22
    %v38 = vpop.permute.xlu0 %37
    %v40 = vlaneseq
    %v41 = vshrl.u32 %v40, 7
    %v42 = vsub.s32 0, %v41
    %v43 = vrot.slane %v35, %v42
    %v44 = vmul.f32 %v38, %v43
    %v45 = vadd.f32 %v34, %v44
    %v46 = vld [vmem:[%s1 + $0x2] sm:$0x1]
    %47 = vset.pattern.permute.xlu0 2
    %48 = vperm.xlu0 %47, %v22
    %v49 = vpop.permute.xlu0 %48
    %v51 = vlaneseq
    %v52 = vshrl.u32 %v51, 7
    %v53 = vsub.s32 0, %v52
    %v54 = vrot.slane %v46, %v53
    %v55 = vmul.f32 %v49, %v54
    %v56 = vadd.f32 %v45, %v55
    %v57 = vld [vmem:[%s1 + $0x3] sm:$0x1]
    %58 = vset.pattern.permute.xlu0 3
    %59 = vperm.xlu0 %58, %v22
    %v60 = vpop.permute.xlu0 %59
    %v62 = vlaneseq
    %v63 = vshrl.u32 %v62, 7
    %v64 = vsub.s32 0, %v63
    %v65 = vrot.slane %v57, %v64
    %v66 = vmul.f32 %v60, %v65
    %v67 = vadd.f32 %v56, %v66
    %vm68 = vcmask 39936
    %69 = vst.msk [vmem:[#allocation2] sm:$0xff] %vm68, %v67
    // Predicated region
    $region14: #{tpu_custom_call.1} parent=1 // pred_check
      _
    $region15: #{tpu_custom_call.1} parent=1 // pred_check_branch
      %71 = sbr.rel (0) target = $region17
    $region16: #{tpu_custom_call.1} parent=1 // pred_region
      %s73 = ssub.s32 128, 128
      %74 = vsyncadd [#allocation3], %s73
      %s76 = sshll.u32 [#allocation2], 4
      %s77 = int_to_ptr.vmem [resolvable:$true] %s76
      %79 = dma.vmem_to_hbm [thread:$0]  %s77, 128, %s3, [#allocation3]
    $region17: #{tpu_custom_call.1} parent=1 // pred_fallthru
      _
    // Predicated region
    $region18: #{tpu_custom_call.1} parent=1 // pred_check
      _
    $region19: #{tpu_custom_call.1} parent=1 // pred_check_branch
      %81 = sbr.rel (0) target = $region21
    $region20: #{tpu_custom_call.1} parent=1 // pred_region
      %82 = dma.done [#allocation3], 128
    $region21: #{tpu_custom_call.1} parent=1 // pred_fallthru
      _
    %83 = vsyncpa [#allocation3], 1

</llo_original>
